<compile_context>
chip_gen: v7x
topology: tpu7x:2x2x1
jax: 0.10.0
libtpu: 0.0.40
codegen_flags: <defaults>
</compile_context>

<pallas_src>
import jax
import jax.numpy as jnp
from jax import lax
from jax.experimental import pallas as pl
from jax.experimental.pallas import tpu as pltpu

EMBEDDING_DIMENSION = 250


def _lstm_softmax_kernel(x_ref, w_ih_ref, w_hh_ref, b_ref, w_l_ref, b_l_ref,
                         out_ref):
    """Whole forward pass in one kernel: LSTM recurrence -> linear -> softmax.

    x_ref    : (T, E)     f32  VMEM  (time-major input, E = 250, unpadded)
    w_ih_ref : (E, 4H)    bf16 VMEM  (weight_ih_l0.T)
    w_hh_ref : (4H, 4H)   bf16 VMEM  (rows [0,H) = weight_hh_l0.T, rest zero)
    b_ref    : (1, 4H)    f32  VMEM  (bias_ih_l0 + bias_hh_l0)
    w_l_ref  : (4H, OUT)  f32  VMEM  (rows [0,H) = linear weight.T, rest zero)
    b_l_ref  : (1, OUT)   f32  VMEM
    out_ref  : (1, OUT)   f32  VMEM  softmax(tag_space)
    """
    T = x_ref.shape[0]
    H4 = w_hh_ref.shape[1]        # 4*H
    H = H4 // 4

    # --- Hoisted, non-recurrent input projection: one (T,E)@(E,4H) bf16 MXU
    # matmul with f32 accumulation, kept as a value (one vreg for T=8,4H=128).
    pg = jnp.dot(x_ref[...].astype(jnp.bfloat16), w_ih_ref[...],
                 preferred_element_type=jnp.float32) + b_ref[...]

    # Static lane mask selecting the `g` (cell-candidate) block [2H, 3H).
    lane = lax.broadcasted_iota(jnp.int32, (1, H4), 1)
    is_g = jnp.logical_and(lane >= 2 * H, lane < 3 * H)

    # Loop-invariant recurrent weight (bf16 -> 8 vregs), read once; the MXU
    # weight push is hoisted out of the statically unrolled recurrence.
    w_hh = w_hh_ref[...]

    # Full-width carried state: only lanes [0, H) are meaningful; the garbage
    # in lanes [H, 4H) is bounded and killed by the zero rows of w_hh / w_l.
    h = jnp.zeros((1, H4), jnp.float32)
    c = jnp.zeros((1, H4), jnp.float32)

    # Statically unrolled serial recurrence (T is small and known at trace
    # time).  Gate order along the 4H axis (PyTorch): [i | f | g | o].
    for t in range(T):
        gates = pg[t:t + 1, :] + jnp.dot(
            h.astype(jnp.bfloat16), w_hh, preferred_element_type=jnp.float32)
        # One EUP pass for all gates: tanh(x) = 2*sigmoid(2x) - 1 on the g
        # block, plain sigmoid elsewhere.
        pre = jnp.where(is_g, gates + gates, gates)
        s = jax.nn.sigmoid(pre)
        act = jnp.where(is_g, s + s - 1.0, s)          # [ i | f | g | o ]
        f_al = pltpu.roll(act, 3 * H, 1)               # f -> block 0 (XLU)
        g_al = pltpu.roll(act, 2 * H, 1)               # g -> block 0
        o_al = pltpu.roll(act, 1 * H, 1)               # o -> block 0
        c = f_al * c + act * g_al                      # block 0: f*c + i*g
        h = o_al * jnp.tanh(c)                         # block 0: o*tanh(c)

    # tag_space = Linear(h_T); output = softmax(tag_space) over the class axis
    # (unbatched input: lstm_output[-1] is a vector, so dim=0 == class axis).
    tag = (jnp.dot(h, w_l_ref[...], preferred_element_type=jnp.float32)
           + b_l_ref[...])
    tag = tag - jnp.max(tag, axis=-1, keepdims=True)
    e = jnp.exp(tag)
    out_ref[...] = e / jnp.sum(e, axis=-1, keepdims=True)   # exact normalize


def prepare_params(w_ih, w_hh, b_ih, b_hh, w_lin, b_lin):
    """One-time weight prep (transpose / zero-pad rows / fuse biases / cast
    MXU operands to bf16) — kept off the per-call path."""
    four_h, _E = w_ih.shape
    H = four_h // 4
    OUT = w_lin.shape[0]

    w_ih_t = jnp.asarray(w_ih, jnp.float32).T.astype(jnp.bfloat16)       # (E, 4H)
    w_hh_t = jnp.zeros((4 * H, 4 * H), jnp.float32)
    w_hh_t = w_hh_t.at[:H, :].set(jnp.asarray(w_hh, jnp.float32).T)
    w_hh_t = w_hh_t.astype(jnp.bfloat16)                                 # (4H, 4H)
    b_all = (jnp.asarray(b_ih, jnp.float32)
             + jnp.asarray(b_hh, jnp.float32)).reshape(1, 4 * H)         # (1, 4H)
    w_l_t = jnp.zeros((4 * H, OUT), jnp.float32)
    w_l_t = w_l_t.at[:H, :].set(jnp.asarray(w_lin, jnp.float32).T)       # (4H, OUT)
    b_l = jnp.asarray(b_lin, jnp.float32).reshape(1, OUT)                # (1, OUT)
    return dict(w_ih=w_ih_t, w_hh=w_hh_t, b=b_all, w_l=w_l_t, b_l=b_l)


@jax.jit
def _forward_impl(x, w_ih_t, w_hh_t, b_all, w_l_t, b_l):
    OUT = b_l.shape[1]
    vmem = pl.BlockSpec(memory_space=pltpu.MemorySpace.VMEM)
    out = pl.pallas_call(
        _lstm_softmax_kernel,
        out_shape=jax.ShapeDtypeStruct((1, OUT), jnp.float32),
        in_specs=[vmem] * 6,
        out_specs=vmem,
    )(x, w_ih_t, w_hh_t, b_all, w_l_t, b_l)
    return out.reshape(OUT)


def model_2_forward(x, params):
    """x: (T, EMBEDDING_DIMENSION) float32. Returns softmax probs (OUT,)."""
    return _forward_impl(jnp.asarray(x, jnp.float32), params["w_ih"],
                         params["w_hh"], params["b"], params["w_l"],
                         params["b_l"])


def _reference_forward(x, w_ih, w_hh, b_ih, b_hh, w_lin, b_lin):
    """Pure-JAX f32 reference mirroring PyTorch nn.LSTM + Linear + softmax(dim=0)."""
    H = w_hh.shape[1]

    def step(carry, x_t):
        h, c = carry
        gates = x_t @ w_ih.T + b_ih + h @ w_hh.T + b_hh
        i = jax.nn.sigmoid(gates[0 * H:1 * H])
        f = jax.nn.sigmoid(gates[1 * H:2 * H])
        g = jnp.tanh(gates[2 * H:3 * H])
        o = jax.nn.sigmoid(gates[3 * H:4 * H])
        c = f * c + i * g
        h = o * jnp.tanh(c)
        return (h, c), None

    (h, _), _ = lax.scan(step, (jnp.zeros(H), jnp.zeros(H)), x)
    tag = h @ w_lin.T + b_lin
    return jax.nn.softmax(tag, axis=0)


if __name__ == "__main__":
    T = 8                       # sequence length
    E = EMBEDDING_DIMENSION     # 250 (fixed by the module)
    H = 32                      # hidden_dimension
    OUT = 16                    # output_dimension

    key = jax.random.PRNGKey(0)
    ks = jax.random.split(key, 8)
    bound = 1.0 / jnp.sqrt(H)   # PyTorch-style uniform init range

    x = jax.random.normal(ks[0], (T, E), jnp.float32)
    w_ih = jax.random.uniform(ks[1], (4 * H, E), jnp.float32, -bound, bound)
    w_hh = jax.random.uniform(ks[2], (4 * H, H), jnp.float32, -bound, bound)
    b_ih = jax.random.uniform(ks[3], (4 * H,), jnp.float32, -bound, bound)
    b_hh = jax.random.uniform(ks[4], (4 * H,), jnp.float32, -bound, bound)
    w_lin = jax.random.uniform(ks[5], (OUT, H), jnp.float32, -bound, bound)
    b_lin = jax.random.uniform(ks[6], (OUT,), jnp.float32, -bound, bound)

    params = prepare_params(w_ih, w_hh, b_ih, b_hh, w_lin, b_lin)
    out = model_2_forward(x, params)
    out = jax.block_until_ready(out)

    ref = _reference_forward(x, w_ih, w_hh, b_ih, b_hh, w_lin, b_lin)
    assert out.shape == (OUT,)
    # Tolerance accounts for bf16 MXU operands (f32 accumulation) vs the pure
    # f32 reference; normalization itself is exact (plain divide).
    assert jnp.allclose(out, ref, rtol=5e-2, atol=5e-3), (out, ref)
    assert jnp.allclose(jnp.sum(out), 1.0, atol=1e-5)

    print("KERNEL_OK")
</pallas_src>

<mosaic_0001>
module attributes {stable_mosaic.version = 11 : i64} {
  func.func @_lstm_softmax_kernel(%arg0: memref<8x250xf32, #tpu.memory_space<vmem>>, %arg1: memref<250x128xbf16, #tpu.memory_space<vmem>>, %arg2: memref<128x128xbf16, #tpu.memory_space<vmem>>, %arg3: memref<1x128xf32, #tpu.memory_space<vmem>>, %arg4: memref<128x16xf32, #tpu.memory_space<vmem>>, %arg5: memref<1x16xf32, #tpu.memory_space<vmem>>, %arg6: memref<1x16xf32, #tpu.memory_space<vmem>>) attributes {dimension_semantics = [], scalar_prefetch = 0 : i64, scratch_operands = 0 : i64, tpu.core_type = #tpu.core_type<tc>} {
    %c0 = arith.constant 0 : index
    %c0_0 = arith.constant 0 : index
    %0 = vector.load %arg0[%c0, %c0_0] : memref<8x250xf32, #tpu.memory_space<vmem>>, vector<8x250xf32>
    %1 = arith.truncf %0 : vector<8x250xf32> to vector<8x250xbf16>
    %c0_1 = arith.constant 0 : index
    %c0_2 = arith.constant 0 : index
    %2 = vector.load %arg1[%c0_1, %c0_2] : memref<250x128xbf16, #tpu.memory_space<vmem>>, vector<250x128xbf16>
    %cst = arith.constant dense<0.000000e+00> : vector<8x128xf32>
    %3 = tpu.matmul %1, %2, %cst {dimension_numbers = #tpu.dot_dimension_numbers<[1], [0], [0], [1], [0, 0, 1, 1], [], []>} : vector<8x250xbf16>, vector<250x128xbf16>, vector<8x128xf32> -> vector<8x128xf32>
    %c0_3 = arith.constant 0 : index
    %c0_4 = arith.constant 0 : index
    %4 = vector.load %arg3[%c0_3, %c0_4] : memref<1x128xf32, #tpu.memory_space<vmem>>, vector<1x128xf32>
    %5 = vector.broadcast %4 : vector<1x128xf32> to vector<8x128xf32>
    %6 = arith.addf %3, %5 : vector<8x128xf32>
    %7 = tpu.iota {dimensions = array<i32: 1>} : vector<1x128xi32>
    %c64_i32 = arith.constant 64 : i32
    %8 = vector.broadcast %c64_i32 : i32 to vector<1x128xi32>
    %9 = arith.cmpi sge, %7, %8 : vector<1x128xi32>
    %c96_i32 = arith.constant 96 : i32
    %10 = vector.broadcast %c96_i32 : i32 to vector<1x128xi32>
    %11 = arith.cmpi slt, %7, %10 : vector<1x128xi32>
    %12 = arith.andi %9, %11 : vector<1x128xi1>
    %c0_5 = arith.constant 0 : index
    %c0_6 = arith.constant 0 : index
    %13 = vector.load %arg2[%c0_5, %c0_6] : memref<128x128xbf16, #tpu.memory_space<vmem>>, vector<128x128xbf16>
    %cst_7 = arith.constant 0.000000e+00 : f32
    %14 = vector.broadcast %cst_7 : f32 to vector<1x128xf32>
    %cst_8 = arith.constant 0.000000e+00 : f32
    %15 = vector.broadcast %cst_8 : f32 to vector<1x128xf32>
    %16 = vector.extract_strided_slice %6 {offsets = [0, 0], sizes = [1, 128], strides = [1, 1]} : vector<8x128xf32> to vector<1x128xf32>
    %17 = arith.truncf %14 : vector<1x128xf32> to vector<1x128xbf16>
    %cst_9 = arith.constant dense<0.000000e+00> : vector<1x128xf32>
    %18 = tpu.matmul %17, %13, %cst_9 {dimension_numbers = #tpu.dot_dimension_numbers<[1], [0], [0], [1], [0, 0, 1, 1], [], []>} : vector<1x128xbf16>, vector<128x128xbf16>, vector<1x128xf32> -> vector<1x128xf32>
    %19 = arith.addf %16, %18 : vector<1x128xf32>
    %20 = arith.addf %19, %19 : vector<1x128xf32>
    %21 = arith.select %12, %20, %19 : vector<1x128xi1>, vector<1x128xf32>
    %22 = arith.negf %21 : vector<1x128xf32>
    %23 = math.exp %22 : vector<1x128xf32>
    %cst_10 = arith.constant 1.000000e+00 : f32
    %24 = vector.broadcast %cst_10 : f32 to vector<1x128xf32>
    %25 = arith.addf %24, %23 : vector<1x128xf32>
    %26 = arith.divf %24, %25 : vector<1x128xf32>
    %27 = arith.addf %26, %26 : vector<1x128xf32>
    %cst_11 = arith.constant 1.000000e+00 : f32
    %28 = vector.broadcast %cst_11 : f32 to vector<1x128xf32>
    %29 = arith.subf %27, %28 : vector<1x128xf32>
    %30 = arith.select %12, %29, %26 : vector<1x128xi1>, vector<1x128xf32>
    %c96_i32_12 = arith.constant 96 : i32
    %31 = tpu.dynamic_rotate %30 by %c96_i32_12 dim 1 : vector<1x128xf32>, i32 -> vector<1x128xf32>
    %c64_i32_13 = arith.constant 64 : i32
    %32 = tpu.dynamic_rotate %30 by %c64_i32_13 dim 1 : vector<1x128xf32>, i32 -> vector<1x128xf32>
    %c32_i32 = arith.constant 32 : i32
    %33 = tpu.dynamic_rotate %30 by %c32_i32 dim 1 : vector<1x128xf32>, i32 -> vector<1x128xf32>
    %34 = arith.mulf %31, %15 : vector<1x128xf32>
    %35 = arith.mulf %30, %32 : vector<1x128xf32>
    %36 = arith.addf %34, %35 : vector<1x128xf32>
    %37 = math.tanh %36 : vector<1x128xf32>
    %38 = arith.mulf %33, %37 : vector<1x128xf32>
    %39 = vector.extract_strided_slice %6 {offsets = [1, 0], sizes = [1, 128], strides = [1, 1]} : vector<8x128xf32> to vector<1x128xf32>
    %40 = arith.truncf %38 : vector<1x128xf32> to vector<1x128xbf16>
    %cst_14 = arith.constant dense<0.000000e+00> : vector<1x128xf32>
    %41 = tpu.matmul %40, %13, %cst_14 {dimension_numbers = #tpu.dot_dimension_numbers<[1], [0], [0], [1], [0, 0, 1, 1], [], []>} : vector<1x128xbf16>, vector<128x128xbf16>, vector<1x128xf32> -> vector<1x128xf32>
    %42 = arith.addf %39, %41 : vector<1x128xf32>
    %43 = arith.addf %42, %42 : vector<1x128xf32>
    %44 = arith.select %12, %43, %42 : vector<1x128xi1>, vector<1x128xf32>
    %45 = arith.negf %44 : vector<1x128xf32>
    %46 = math.exp %45 : vector<1x128xf32>
    %cst_15 = arith.constant 1.000000e+00 : f32
    %47 = vector.broadcast %cst_15 : f32 to vector<1x128xf32>
    %48 = arith.addf %47, %46 : vector<1x128xf32>
    %49 = arith.divf %47, %48 : vector<1x128xf32>
    %50 = arith.addf %49, %49 : vector<1x128xf32>
    %cst_16 = arith.constant 1.000000e+00 : f32
    %51 = vector.broadcast %cst_16 : f32 to vector<1x128xf32>
    %52 = arith.subf %50, %51 : vector<1x128xf32>
    %53 = arith.select %12, %52, %49 : vector<1x128xi1>, vector<1x128xf32>
    %c96_i32_17 = arith.constant 96 : i32
    %54 = tpu.dynamic_rotate %53 by %c96_i32_17 dim 1 : vector<1x128xf32>, i32 -> vector<1x128xf32>
    %c64_i32_18 = arith.constant 64 : i32
    %55 = tpu.dynamic_rotate %53 by %c64_i32_18 dim 1 : vector<1x128xf32>, i32 -> vector<1x128xf32>
    %c32_i32_19 = arith.constant 32 : i32
    %56 = tpu.dynamic_rotate %53 by %c32_i32_19 dim 1 : vector<1x128xf32>, i32 -> vector<1x128xf32>
    %57 = arith.mulf %54, %36 : vector<1x128xf32>
    %58 = arith.mulf %53, %55 : vector<1x128xf32>
    %59 = arith.addf %57, %58 : vector<1x128xf32>
    %60 = math.tanh %59 : vector<1x128xf32>
    %61 = arith.mulf %56, %60 : vector<1x128xf32>
    %62 = vector.extract_strided_slice %6 {offsets = [2, 0], sizes = [1, 128], strides = [1, 1]} : vector<8x128xf32> to vector<1x128xf32>
    %63 = arith.truncf %61 : vector<1x128xf32> to vector<1x128xbf16>
    %cst_20 = arith.constant dense<0.000000e+00> : vector<1x128xf32>
    %64 = tpu.matmul %63, %13, %cst_20 {dimension_numbers = #tpu.dot_dimension_numbers<[1], [0], [0], [1], [0, 0, 1, 1], [], []>} : vector<1x128xbf16>, vector<128x128xbf16>, vector<1x128xf32> -> vector<1x128xf32>
    %65 = arith.addf %62, %64 : vector<1x128xf32>
    %66 = arith.addf %65, %65 : vector<1x128xf32>
    %67 = arith.select %12, %66, %65 : vector<1x128xi1>, vector<1x128xf32>
    %68 = arith.negf %67 : vector<1x128xf32>
    %69 = math.exp %68 : vector<1x128xf32>
    %cst_21 = arith.constant 1.000000e+00 : f32
    %70 = vector.broadcast %cst_21 : f32 to vector<1x128xf32>
    %71 = arith.addf %70, %69 : vector<1x128xf32>
    %72 = arith.divf %70, %71 : vector<1x128xf32>
    %73 = arith.addf %72, %72 : vector<1x128xf32>
    %cst_22 = arith.constant 1.000000e+00 : f32
    %74 = vector.broadcast %cst_22 : f32 to vector<1x128xf32>
    %75 = arith.subf %73, %74 : vector<1x128xf32>
    %76 = arith.select %12, %75, %72 : vector<1x128xi1>, vector<1x128xf32>
    %c96_i32_23 = arith.constant 96 : i32
    %77 = tpu.dynamic_rotate %76 by %c96_i32_23 dim 1 : vector<1x128xf32>, i32 -> vector<1x128xf32>
    %c64_i32_24 = arith.constant 64 : i32
    %78 = tpu.dynamic_rotate %76 by %c64_i32_24 dim 1 : vector<1x128xf32>, i32 -> vector<1x128xf32>
    %c32_i32_25 = arith.constant 32 : i32
    %79 = tpu.dynamic_rotate %76 by %c32_i32_25 dim 1 : vector<1x128xf32>, i32 -> vector<1x128xf32>
    %80 = arith.mulf %77, %59 : vector<1x128xf32>
    %81 = arith.mulf %76, %78 : vector<1x128xf32>
    %82 = arith.addf %80, %81 : vector<1x128xf32>
    %83 = math.tanh %82 : vector<1x128xf32>
    %84 = arith.mulf %79, %83 : vector<1x128xf32>
    %85 = vector.extract_strided_slice %6 {offsets = [3, 0], sizes = [1, 128], strides = [1, 1]} : vector<8x128xf32> to vector<1x128xf32>
    %86 = arith.truncf %84 : vector<1x128xf32> to vector<1x128xbf16>
    %cst_26 = arith.constant dense<0.000000e+00> : vector<1x128xf32>
    %87 = tpu.matmul %86, %13, %cst_26 {dimension_numbers = #tpu.dot_dimension_numbers<[1], [0], [0], [1], [0, 0, 1, 1], [], []>} : vector<1x128xbf16>, vector<128x128xbf16>, vector<1x128xf32> -> vector<1x128xf32>
    %88 = arith.addf %85, %87 : vector<1x128xf32>
    %89 = arith.addf %88, %88 : vector<1x128xf32>
    %90 = arith.select %12, %89, %88 : vector<1x128xi1>, vector<1x128xf32>
    %91 = arith.negf %90 : vector<1x128xf32>
    %92 = math.exp %91 : vector<1x128xf32>
    %cst_27 = arith.constant 1.000000e+00 : f32
    %93 = vector.broadcast %cst_27 : f32 to vector<1x128xf32>
    %94 = arith.addf %93, %92 : vector<1x128xf32>
    %95 = arith.divf %93, %94 : vector<1x128xf32>
    %96 = arith.addf %95, %95 : vector<1x128xf32>
    %cst_28 = arith.constant 1.000000e+00 : f32
    %97 = vector.broadcast %cst_28 : f32 to vector<1x128xf32>
    %98 = arith.subf %96, %97 : vector<1x128xf32>
    %99 = arith.select %12, %98, %95 : vector<1x128xi1>, vector<1x128xf32>
    %c96_i32_29 = arith.constant 96 : i32
    %100 = tpu.dynamic_rotate %99 by %c96_i32_29 dim 1 : vector<1x128xf32>, i32 -> vector<1x128xf32>
    %c64_i32_30 = arith.constant 64 : i32
    %101 = tpu.dynamic_rotate %99 by %c64_i32_30 dim 1 : vector<1x128xf32>, i32 -> vector<1x128xf32>
    %c32_i32_31 = arith.constant 32 : i32
    %102 = tpu.dynamic_rotate %99 by %c32_i32_31 dim 1 : vector<1x128xf32>, i32 -> vector<1x128xf32>
    %103 = arith.mulf %100, %82 : vector<1x128xf32>
    %104 = arith.mulf %99, %101 : vector<1x128xf32>
    %105 = arith.addf %103, %104 : vector<1x128xf32>
    %106 = math.tanh %105 : vector<1x128xf32>
    %107 = arith.mulf %102, %106 : vector<1x128xf32>
    %108 = vector.extract_strided_slice %6 {offsets = [4, 0], sizes = [1, 128], strides = [1, 1]} : vector<8x128xf32> to vector<1x128xf32>
    %109 = arith.truncf %107 : vector<1x128xf32> to vector<1x128xbf16>
    %cst_32 = arith.constant dense<0.000000e+00> : vector<1x128xf32>
    %110 = tpu.matmul %109, %13, %cst_32 {dimension_numbers = #tpu.dot_dimension_numbers<[1], [0], [0], [1], [0, 0, 1, 1], [], []>} : vector<1x128xbf16>, vector<128x128xbf16>, vector<1x128xf32> -> vector<1x128xf32>
    %111 = arith.addf %108, %110 : vector<1x128xf32>
    %112 = arith.addf %111, %111 : vector<1x128xf32>
    %113 = arith.select %12, %112, %111 : vector<1x128xi1>, vector<1x128xf32>
    %114 = arith.negf %113 : vector<1x128xf32>
    %115 = math.exp %114 : vector<1x128xf32>
    %cst_33 = arith.constant 1.000000e+00 : f32
    %116 = vector.broadcast %cst_33 : f32 to vector<1x128xf32>
    %117 = arith.addf %116, %115 : vector<1x128xf32>
    %118 = arith.divf %116, %117 : vector<1x128xf32>
    %119 = arith.addf %118, %118 : vector<1x128xf32>
    %cst_34 = arith.constant 1.000000e+00 : f32
    %120 = vector.broadcast %cst_34 : f32 to vector<1x128xf32>
    %121 = arith.subf %119, %120 : vector<1x128xf32>
    %122 = arith.select %12, %121, %118 : vector<1x128xi1>, vector<1x128xf32>
    %c96_i32_35 = arith.constant 96 : i32
    %123 = tpu.dynamic_rotate %122 by %c96_i32_35 dim 1 : vector<1x128xf32>, i32 -> vector<1x128xf32>
    %c64_i32_36 = arith.constant 64 : i32
    %124 = tpu.dynamic_rotate %122 by %c64_i32_36 dim 1 : vector<1x128xf32>, i32 -> vector<1x128xf32>
    %c32_i32_37 = arith.constant 32 : i32
    %125 = tpu.dynamic_rotate %122 by %c32_i32_37 dim 1 : vector<1x128xf32>, i32 -> vector<1x128xf32>
    %126 = arith.mulf %123, %105 : vector<1x128xf32>
    %127 = arith.mulf %122, %124 : vector<1x128xf32>
    %128 = arith.addf %126, %127 : vector<1x128xf32>
    %129 = math.tanh %128 : vector<1x128xf32>
    %130 = arith.mulf %125, %129 : vector<1x128xf32>
    %131 = vector.extract_strided_slice %6 {offsets = [5, 0], sizes = [1, 128], strides = [1, 1]} : vector<8x128xf32> to vector<1x128xf32>
    %132 = arith.truncf %130 : vector<1x128xf32> to vector<1x128xbf16>
    %cst_38 = arith.constant dense<0.000000e+00> : vector<1x128xf32>
    %133 = tpu.matmul %132, %13, %cst_38 {dimension_numbers = #tpu.dot_dimension_numbers<[1], [0], [0], [1], [0, 0, 1, 1], [], []>} : vector<1x128xbf16>, vector<128x128xbf16>, vector<1x128xf32> -> vector<1x128xf32>
    %134 = arith.addf %131, %133 : vector<1x128xf32>
    %135 = arith.addf %134, %134 : vector<1x128xf32>
    %136 = arith.select %12, %135, %134 : vector<1x128xi1>, vector<1x128xf32>
    %137 = arith.negf %136 : vector<1x128xf32>
    %138 = math.exp %137 : vector<1x128xf32>
    %cst_39 = arith.constant 1.000000e+00 : f32
    %139 = vector.broadcast %cst_39 : f32 to vector<1x128xf32>
    %140 = arith.addf %139, %138 : vector<1x128xf32>
    %141 = arith.divf %139, %140 : vector<1x128xf32>
    %142 = arith.addf %141, %141 : vector<1x128xf32>
    %cst_40 = arith.constant 1.000000e+00 : f32
    %143 = vector.broadcast %cst_40 : f32 to vector<1x128xf32>
    %144 = arith.subf %142, %143 : vector<1x128xf32>
    %145 = arith.select %12, %144, %141 : vector<1x128xi1>, vector<1x128xf32>
    %c96_i32_41 = arith.constant 96 : i32
    %146 = tpu.dynamic_rotate %145 by %c96_i32_41 dim 1 : vector<1x128xf32>, i32 -> vector<1x128xf32>
    %c64_i32_42 = arith.constant 64 : i32
    %147 = tpu.dynamic_rotate %145 by %c64_i32_42 dim 1 : vector<1x128xf32>, i32 -> vector<1x128xf32>
    %c32_i32_43 = arith.constant 32 : i32
    %148 = tpu.dynamic_rotate %145 by %c32_i32_43 dim 1 : vector<1x128xf32>, i32 -> vector<1x128xf32>
    %149 = arith.mulf %146, %128 : vector<1x128xf32>
    %150 = arith.mulf %145, %147 : vector<1x128xf32>
    %151 = arith.addf %149, %150 : vector<1x128xf32>
    %152 = math.tanh %151 : vector<1x128xf32>
    %153 = arith.mulf %148, %152 : vector<1x128xf32>
    %154 = vector.extract_strided_slice %6 {offsets = [6, 0], sizes = [1, 128], strides = [1, 1]} : vector<8x128xf32> to vector<1x128xf32>
    %155 = arith.truncf %153 : vector<1x128xf32> to vector<1x128xbf16>
    %cst_44 = arith.constant dense<0.000000e+00> : vector<1x128xf32>
    %156 = tpu.matmul %155, %13, %cst_44 {dimension_numbers = #tpu.dot_dimension_numbers<[1], [0], [0], [1], [0, 0, 1, 1], [], []>} : vector<1x128xbf16>, vector<128x128xbf16>, vector<1x128xf32> -> vector<1x128xf32>
    %157 = arith.addf %154, %156 : vector<1x128xf32>
    %158 = arith.addf %157, %157 : vector<1x128xf32>
    %159 = arith.select %12, %158, %157 : vector<1x128xi1>, vector<1x128xf32>
    %160 = arith.negf %159 : vector<1x128xf32>
    %161 = math.exp %160 : vector<1x128xf32>
    %cst_45 = arith.constant 1.000000e+00 : f32
    %162 = vector.broadcast %cst_45 : f32 to vector<1x128xf32>
    %163 = arith.addf %162, %161 : vector<1x128xf32>
    %164 = arith.divf %162, %163 : vector<1x128xf32>
    %165 = arith.addf %164, %164 : vector<1x128xf32>
    %cst_46 = arith.constant 1.000000e+00 : f32
    %166 = vector.broadcast %cst_46 : f32 to vector<1x128xf32>
    %167 = arith.subf %165, %166 : vector<1x128xf32>
    %168 = arith.select %12, %167, %164 : vector<1x128xi1>, vector<1x128xf32>
    %c96_i32_47 = arith.constant 96 : i32
    %169 = tpu.dynamic_rotate %168 by %c96_i32_47 dim 1 : vector<1x128xf32>, i32 -> vector<1x128xf32>
    %c64_i32_48 = arith.constant 64 : i32
    %170 = tpu.dynamic_rotate %168 by %c64_i32_48 dim 1 : vector<1x128xf32>, i32 -> vector<1x128xf32>
    %c32_i32_49 = arith.constant 32 : i32
    %171 = tpu.dynamic_rotate %168 by %c32_i32_49 dim 1 : vector<1x128xf32>, i32 -> vector<1x128xf32>
    %172 = arith.mulf %169, %151 : vector<1x128xf32>
    %173 = arith.mulf %168, %170 : vector<1x128xf32>
    %174 = arith.addf %172, %173 : vector<1x128xf32>
    %175 = math.tanh %174 : vector<1x128xf32>
    %176 = arith.mulf %171, %175 : vector<1x128xf32>
    %177 = vector.extract_strided_slice %6 {offsets = [7, 0], sizes = [1, 128], strides = [1, 1]} : vector<8x128xf32> to vector<1x128xf32>
    %178 = arith.truncf %176 : vector<1x128xf32> to vector<1x128xbf16>
    %cst_50 = arith.constant dense<0.000000e+00> : vector<1x128xf32>
    %179 = tpu.matmul %178, %13, %cst_50 {dimension_numbers = #tpu.dot_dimension_numbers<[1], [0], [0], [1], [0, 0, 1, 1], [], []>} : vector<1x128xbf16>, vector<128x128xbf16>, vector<1x128xf32> -> vector<1x128xf32>
    %180 = arith.addf %177, %179 : vector<1x128xf32>
    %181 = arith.addf %180, %180 : vector<1x128xf32>
    %182 = arith.select %12, %181, %180 : vector<1x128xi1>, vector<1x128xf32>
    %183 = arith.negf %182 : vector<1x128xf32>
    %184 = math.exp %183 : vector<1x128xf32>
    %cst_51 = arith.constant 1.000000e+00 : f32
    %185 = vector.broadcast %cst_51 : f32 to vector<1x128xf32>
    %186 = arith.addf %185, %184 : vector<1x128xf32>
    %187 = arith.divf %185, %186 : vector<1x128xf32>
    %188 = arith.addf %187, %187 : vector<1x128xf32>
    %cst_52 = arith.constant 1.000000e+00 : f32
    %189 = vector.broadcast %cst_52 : f32 to vector<1x128xf32>
    %190 = arith.subf %188, %189 : vector<1x128xf32>
    %191 = arith.select %12, %190, %187 : vector<1x128xi1>, vector<1x128xf32>
    %c96_i32_53 = arith.constant 96 : i32
    %192 = tpu.dynamic_rotate %191 by %c96_i32_53 dim 1 : vector<1x128xf32>, i32 -> vector<1x128xf32>
    %c64_i32_54 = arith.constant 64 : i32
    %193 = tpu.dynamic_rotate %191 by %c64_i32_54 dim 1 : vector<1x128xf32>, i32 -> vector<1x128xf32>
    %c32_i32_55 = arith.constant 32 : i32
    %194 = tpu.dynamic_rotate %191 by %c32_i32_55 dim 1 : vector<1x128xf32>, i32 -> vector<1x128xf32>
    %195 = arith.mulf %192, %174 : vector<1x128xf32>
    %196 = arith.mulf %191, %193 : vector<1x128xf32>
    %197 = arith.addf %195, %196 : vector<1x128xf32>
    %198 = math.tanh %197 : vector<1x128xf32>
    %199 = arith.mulf %194, %198 : vector<1x128xf32>
    %c0_56 = arith.constant 0 : index
    %c0_57 = arith.constant 0 : index
    %200 = vector.load %arg4[%c0_56, %c0_57] : memref<128x16xf32, #tpu.memory_space<vmem>>, vector<128x16xf32>
    %cst_58 = arith.constant dense<0.000000e+00> : vector<1x16xf32>
    %201 = tpu.matmul %199, %200, %cst_58 {dimension_numbers = #tpu.dot_dimension_numbers<[1], [0], [0], [1], [0, 0, 1, 1], [], []>} : vector<1x128xf32>, vector<128x16xf32>, vector<1x16xf32> -> vector<1x16xf32>
    %c0_59 = arith.constant 0 : index
    %c0_60 = arith.constant 0 : index
    %202 = vector.load %arg5[%c0_59, %c0_60] : memref<1x16xf32, #tpu.memory_space<vmem>>, vector<1x16xf32>
    %203 = arith.addf %201, %202 : vector<1x16xf32>
    %cst_61 = arith.constant dense<0xFF800000> : vector<1xf32>
    %204 = vector.multi_reduction <maximumf>, %203, %cst_61 [1] : vector<1x16xf32> to vector<1xf32>
    %205 = vector.shape_cast %204 : vector<1xf32> to vector<1x1xf32>
    %206 = vector.broadcast %205 : vector<1x1xf32> to vector<1x16xf32>
    %207 = arith.subf %203, %206 : vector<1x16xf32>
    %208 = math.exp %207 : vector<1x16xf32>
    %cst_62 = arith.constant dense<0.000000e+00> : vector<1xf32>
    %209 = vector.multi_reduction <add>, %208, %cst_62 [1] : vector<1x16xf32> to vector<1xf32>
    %210 = vector.shape_cast %209 : vector<1xf32> to vector<1x1xf32>
    %211 = vector.broadcast %210 : vector<1x1xf32> to vector<1x16xf32>
    %212 = arith.divf %208, %211 : vector<1x16xf32>
    %c0_63 = arith.constant 0 : index
    %c0_64 = arith.constant 0 : index
    %213 = vector.load %arg6[%c0_63, %c0_64] : memref<1x16xf32, #tpu.memory_space<vmem>>, vector<1x16xf32>
    tpu.vector_store %arg6[%c0_63, %c0_64], %212 {strides = array<i32>} : memref<1x16xf32, #tpu.memory_space<vmem>>, vector<1x16xf32>,
    return
  }
}

</mosaic_0001>

<llo_original>
// kernel: _forward_impl.1
$region0: #{_forward_impl.1}
  #allocation0 [shape = 'u32[]', space=smem, size = 0x4, offset = 0x4, fixed_abs, tag = 'smem constant byte address 0x4 - core index']
  #allocation1 [shape = 'u32[144,128]{1,0:T(1,128)}', space=vmem, size = 0x12000, scoped, tag = 'internal scratch']
  %s0 = inlined_call_operand.vmem [shape: f32[8,250], index: 0, kind: input, shape index: {}]
  %s1 = inlined_call_operand.vmem [shape: bf16[250,128], index: 1, kind: input, shape index: {}]
  %s2 = inlined_call_operand.hbm [shape: bf16[128,128], index: 2, kind: input, shape index: {}]
  %s3 = inlined_call_operand.vmem [shape: f32[1,128], index: 3, kind: input, shape index: {}]
  %s4 = inlined_call_operand.vmem [shape: f32[128,16], index: 4, kind: input, shape index: {}]
  %s5 = inlined_call_operand.vmem [shape: f32[1,16], index: 5, kind: input, shape index: {}]
  %s6 = inlined_call_operand.hbm [shape: f32[1,16], index: 6, kind: output, shape index: {}]
  %s7 = sld [smem:[#allocation0]]
  $region38: #{_forward_impl.1} parent=0
    _
  %s9 = ssub.s32 1, %s7
  %s10 = scalar_select 0, %s9, %s7
  $region1: #{_forward_impl.1} parent=0
    #allocation2 [shape = 'u8[32768]{0}', space=vmem, size = 0x8000, scoped, tag = 'input window, operand 2, single buffered']
    #allocation3 [shape = 's32[1]{0}', space=sflag, size = 0x4, scoped, tag = 'scoped memory for _forward_impl.1']
    #allocation4 [shape = 's32[1]{0}', space=sflag, size = 0x4, scoped, tag = 'scoped memory for _forward_impl.1']
    #allocation5 [shape = 'u8[512]{0}', space=vmem, size = 0x400, scoped, tag = 'output window, operand 0, single buffered']
    %11 = vsyncpa [#allocation3], 0
    %12 = vsyncpa [#allocation4], 0
    // Predicated region
    $region2: #{_forward_impl.1} parent=1 // pred_check
      _
    $region3: #{_forward_impl.1} parent=1 // pred_check_branch
      %14 = sbr.rel (0) target = $region5
    $region4: #{_forward_impl.1} parent=1 // pred_region
      _
    $region5: #{_forward_impl.1} parent=1 // pred_fallthru
      _
    // Predicated region
    $region6: #{_forward_impl.1} parent=1 // pred_check
      _
    $region7: #{_forward_impl.1} parent=1 // pred_check_branch
      %16 = sbr.rel (0) target = $region9
    $region8: #{_forward_impl.1} parent=1 // pred_region
      _
    $region9: #{_forward_impl.1} parent=1 // pred_fallthru
      _
    // Predicated region
    $region10: #{_forward_impl.1} parent=1 // pred_check
      _
    $region11: #{_forward_impl.1} parent=1 // pred_check_branch
      %18 = sbr.rel (0) target = $region13
    $region12: #{_forward_impl.1} parent=1 // pred_region
      %s20 = ssub.s32 1024, 1024
      %21 = vsyncadd [#allocation3], %s20
      %s22 = sshll.u32 [#allocation2], 4
      %s23 = int_to_ptr.vmem [resolvable:$true] %s22
      %28 = dma.hbm_to_vmem [thread:$0]  %s2, 1024, %s23, [#allocation3], 64, 64, 4
    $region13: #{_forward_impl.1} parent=1 // pred_fallthru
      _
    // Predicated region
    $region14: #{_forward_impl.1} parent=1 // pred_check
      _
    $region15: #{_forward_impl.1} parent=1 // pred_check_branch
      %30 = sbr.rel (0) target = $region17
    $region16: #{_forward_impl.1} parent=1 // pred_region
      _
    $region17: #{_forward_impl.1} parent=1 // pred_fallthru
      _
    // Predicated region
    $region18: #{_forward_impl.1} parent=1 // pred_check
      _
    $region19: #{_forward_impl.1} parent=1 // pred_check_branch
      %32 = sbr.rel (0) target = $region21
    $region20: #{_forward_impl.1} parent=1 // pred_region
      _
    $region21: #{_forward_impl.1} parent=1 // pred_fallthru
      _
    // Predicated region
    $region22: #{_forward_impl.1} parent=1 // pred_check
      _
    $region23: #{_forward_impl.1} parent=1 // pred_check_branch
      %34 = sbr.rel (0) target = $region25
    $region24: #{_forward_impl.1} parent=1 // pred_region
      _
    $region25: #{_forward_impl.1} parent=1 // pred_fallthru
      _
    // Predicated region
    $region26: #{_forward_impl.1} parent=1 // pred_check
      _
    $region27: #{_forward_impl.1} parent=1 // pred_check_branch
      %36 = sbr.rel (0) target = $region29
    $region28: #{_forward_impl.1} parent=1 // pred_region
      %37 = dma.done [#allocation3], 1024
    $region29: #{_forward_impl.1} parent=1 // pred_fallthru
      _
    %v39 = vld [vmem:[%s0] sm:$0xff]
    %v40 = vld [vmem:[%s0 + $0x8] sm:$0xff]
    %v41 = vpack.c.bf16 %v39, %v39
    %v42 = vpack.c.bf16 %v40, %v40
    %v43 = vld [vmem:[%s1] sm:$0xf]
    %v44 = vld [vmem:[%s1 + $0x4] sm:$0xf]
    %v45 = vld [vmem:[%s1 + $0x8] sm:$0xf]
    %v46 = vld [vmem:[%s1 + $0xc] sm:$0xf]
    %v47 = vld [vmem:[%s1 + $0x10] sm:$0xf]
    %v48 = vld [vmem:[%s1 + $0x14] sm:$0xf]
    %v49 = vld [vmem:[%s1 + $0x18] sm:$0xf]
    %v50 = vld [vmem:[%s1 + $0x1c] sm:$0xf]
    %v51 = vld [vmem:[%s1 + $0x20] sm:$0xf]
    %v52 = vld [vmem:[%s1 + $0x24] sm:$0xf]
    %v53 = vld [vmem:[%s1 + $0x28] sm:$0xf]
    %v54 = vld [vmem:[%s1 + $0x2c] sm:$0xf]
    %v55 = vld [vmem:[%s1 + $0x30] sm:$0xf]
    %v56 = vld [vmem:[%s1 + $0x34] sm:$0xf]
    %v57 = vld [vmem:[%s1 + $0x38] sm:$0xf]
    %v58 = vld [vmem:[%s1 + $0x3c] sm:$0xf]
    %v59 = vld [vmem:[%s1 + $0x40] sm:$0xf]
    %v60 = vld [vmem:[%s1 + $0x44] sm:$0xf]
    %v61 = vld [vmem:[%s1 + $0x48] sm:$0xf]
    %v62 = vld [vmem:[%s1 + $0x4c] sm:$0xf]
    %v63 = vld [vmem:[%s1 + $0x50] sm:$0xf]
    %v64 = vld [vmem:[%s1 + $0x54] sm:$0xf]
    %v65 = vld [vmem:[%s1 + $0x58] sm:$0xf]
    %v66 = vld [vmem:[%s1 + $0x5c] sm:$0xf]
    %v67 = vld [vmem:[%s1 + $0x60] sm:$0xf]
    %v68 = vld [vmem:[%s1 + $0x64] sm:$0xf]
    %v69 = vld [vmem:[%s1 + $0x68] sm:$0xf]
    %v70 = vld [vmem:[%s1 + $0x6c] sm:$0xf]
    %v71 = vld [vmem:[%s1 + $0x70] sm:$0xf]
    %v72 = vld [vmem:[%s1 + $0x74] sm:$0xf]
    %v73 = vld [vmem:[%s1 + $0x78] sm:$0xf]
    %v74 = vld [vmem:[%s1 + $0x7c] sm:$0x1]
    %v75 = vld [vmem:[%s3] sm:$0x1]
    %v77 = vlaneseq
    %v78 = vshrl.u32 %v77, 7
    %v79 = vsub.s32 0, %v78
    %v80 = vrot.slane %v75, %v79
    %v114 = vunpack.c.l.b16 %v43
    %v115 = vunpack.c.l.b16 %v44
    %v116 = vunpack.c.l.b16 %v45
    %v117 = vunpack.c.l.b16 %v46
    %v118 = vunpack.c.l.b16 %v47
    %v119 = vunpack.c.l.b16 %v48
    %v120 = vunpack.c.l.b16 %v49
    %v121 = vunpack.c.l.b16 %v50
    %v122 = vunpack.c.l.b16 %v51
    %v123 = vunpack.c.l.b16 %v52
    %v124 = vunpack.c.l.b16 %v53
    %v125 = vunpack.c.l.b16 %v54
    %v126 = vunpack.c.l.b16 %v55
    %v127 = vunpack.c.l.b16 %v56
    %v128 = vunpack.c.l.b16 %v57
    %v129 = vunpack.c.l.b16 %v58
    %v130 = vunpack.c.l.b16 %v59
    %v131 = vunpack.c.l.b16 %v60
    %v132 = vunpack.c.l.b16 %v61
    %v133 = vunpack.c.l.b16 %v62
    %v134 = vunpack.c.l.b16 %v63
    %v135 = vunpack.c.l.b16 %v64
    %v136 = vunpack.c.l.b16 %v65
    %v137 = vunpack.c.l.b16 %v66
    %v138 = vunpack.c.l.b16 %v67
    %v139 = vunpack.c.l.b16 %v68
    %v140 = vunpack.c.l.b16 %v69
    %v141 = vunpack.c.l.b16 %v70
    %v142 = vunpack.c.l.b16 %v71
    %v143 = vunpack.c.l.b16 %v72
    %v144 = vunpack.c.l.b16 %v73
    %v145 = vunpack.c.l.b16 %v74
    %v146 = vpack.c.b16 %v115, %v114
    %v147 = vpack.c.b16 %v117, %v116
    %v148 = vpack.c.b16 %v119, %v118
    %v149 = vpack.c.b16 %v121, %v120
    %v150 = vpack.c.b16 %v123, %v122
    %v151 = vpack.c.b16 %v125, %v124
    %v152 = vpack.c.b16 %v127, %v126
    %v153 = vpack.c.b16 %v129, %v128
    %v154 = vpack.c.b16 %v131, %v130
    %v155 = vpack.c.b16 %v133, %v132
    %v156 = vpack.c.b16 %v135, %v134
    %v157 = vpack.c.b16 %v137, %v136
    %v158 = vpack.c.b16 %v139, %v138
    %v159 = vpack.c.b16 %v141, %v140
    %v160 = vpack.c.b16 %v143, %v142
    %v161 = vpack.c.b16 %v145, %v144
    %vm177 = vcmask 998400
    %v179 = vsel %vm177, %v42, 0
    %vm181 = vcmask 1044480
    %v183 = vsel %vm181, %v161, 0
    %185 = vmatprep.subr.bf16.mxu0 0
    %186 = vmatpush1.bf16.msra.mxu0 %v146
    %187 = vmatprep.subr.bf16.mxu0 0
    %188 = vmatpush1.bf16.msra.mxu0 %v147
    %189 = vmatprep.subr.bf16.mxu0 0
    %190 = vmatpush1.bf16.msra.mxu0 %v148
    %191 = vmatprep.subr.bf16.mxu0 0
    %192 = vmatpush1.bf16.msra.mxu0 %v149
    %193 = vmatprep.subr.bf16.mxu0 0
    %194 = vmatpush1.bf16.msra.mxu0 %v150
    %195 = vmatprep.subr.bf16.mxu0 0
    %196 = vmatpush1.bf16.msra.mxu0 %v151
    %197 = vmatprep.subr.bf16.mxu0 0
    %198 = vmatpush1.bf16.msra.mxu0 %v152
    %199 = vmatprep.subr.bf16.mxu0 0
    %200 = vmatpush1.bf16.msra.mxu0 %v153
    %201 = vmatprep.subr.bf16.mxu0 0
    %202 = vmatpush1.bf16.msra.mxu0 %v154
    %203 = vmatprep.subr.bf16.mxu0 0
    %204 = vmatpush1.bf16.msra.mxu0 %v155
    %205 = vmatprep.subr.bf16.mxu0 0
    %206 = vmatpush1.bf16.msra.mxu0 %v156
    %207 = vmatprep.subr.bf16.mxu0 0
    %208 = vmatpush1.bf16.msra.mxu0 %v157
    %209 = vmatprep.subr.bf16.mxu0 0
    %210 = vmatpush1.bf16.msra.mxu0 %v158
    %211 = vmatprep.subr.bf16.mxu0 0
    %212 = vmatpush1.bf16.msra.mxu0 %v159
    %213 = vmatprep.subr.bf16.mxu0 0
    %214 = vmatpush1.bf16.msra.mxu0 %v160
    %215 = vmatprep.subr.bf16.mxu0 0
    %216 = vmatpush1.bf16.msra.mxu0 %v183
    %217 = vmatprep.mubr.bf16.mxu0 %v179
    %218 = vmatmul.mubr.bf16.gmra.mrb[0].mxu0 %v41
    %v219 = vpop.f32.mrb[0].mxu0
    %v220 = vadd.f32 %v80, %v219
    %v221 = vpop.f32.mrb[0].mxu0
    %v222 = vpop.f32.mrb[0].mxu0
    %v223 = vpop.f32.mrb[0].mxu0
    %224 = vdwg.mxu0
    %v225 = vlaneseq
    %v226 = vand.u32 %v225, 127
    %vm227 = vcmp.ge.s32.totalorder %v226, 64
    %vm228 = vcmp.lt.s32.totalorder %v226, 96
    %vm229 = vmand %vm227, %vm228
    %v230 = vld [vmem:[#allocation2] sm:$0xf]
    %v231 = vld [vmem:[#allocation2 + $0x4] sm:$0xf]
    %v232 = vld [vmem:[#allocation2 + $0x8] sm:$0xf]
    %v233 = vld [vmem:[#allocation2 + $0xc] sm:$0xf]
    %v234 = vld [vmem:[#allocation2 + $0x10] sm:$0xf]
    %v235 = vld [vmem:[#allocation2 + $0x14] sm:$0xf]
    %v236 = vld [vmem:[#allocation2 + $0x18] sm:$0xf]
    %v237 = vld [vmem:[#allocation2 + $0x1c] sm:$0xf]
    %v238 = vld [vmem:[#allocation2 + $0x20] sm:$0xf]
    %v239 = vld [vmem:[#allocation2 + $0x24] sm:$0xf]
    %v240 = vld [vmem:[#allocation2 + $0x28] sm:$0xf]
    %v241 = vld [vmem:[#allocation2 + $0x2c] sm:$0xf]
    %v242 = vld [vmem:[#allocation2 + $0x30] sm:$0xf]
    %v243 = vld [vmem:[#allocation2 + $0x34] sm:$0xf]
    %v244 = vld [vmem:[#allocation2 + $0x38] sm:$0xf]
    %v245 = vld [vmem:[#allocation2 + $0x3c] sm:$0xf]
    %v262 = vunpack.c.l.b16 %v230
    %v263 = vunpack.c.l.b16 %v231
    %v264 = vunpack.c.l.b16 %v232
    %v265 = vunpack.c.l.b16 %v233
    %v266 = vunpack.c.l.b16 %v234
    %v267 = vunpack.c.l.b16 %v235
    %v268 = vunpack.c.l.b16 %v236
    %v269 = vunpack.c.l.b16 %v237
    %v270 = vunpack.c.l.b16 %v238
    %v271 = vunpack.c.l.b16 %v239
    %v272 = vunpack.c.l.b16 %v240
    %v273 = vunpack.c.l.b16 %v241
    %v274 = vunpack.c.l.b16 %v242
    %v275 = vunpack.c.l.b16 %v243
    %v276 = vunpack.c.l.b16 %v244
    %v277 = vunpack.c.l.b16 %v245
    %v278 = vpack.c.b16 %v263, %v262
    %v279 = vpack.c.b16 %v265, %v264
    %v280 = vpack.c.b16 %v267, %v266
    %v281 = vpack.c.b16 %v269, %v268
    %v282 = vpack.c.b16 %v271, %v270
    %v283 = vpack.c.b16 %v273, %v272
    %v284 = vpack.c.b16 %v275, %v274
    %v285 = vpack.c.b16 %v277, %v276
    %294 = vmatprep.subr.bf16.mxu0 0
    %295 = vmatpush1.bf16.msra.mxu0 %v278
    %296 = vmatprep.subr.bf16.mxu0 0
    %297 = vmatpush1.bf16.msra.mxu0 %v279
    %298 = vmatprep.subr.bf16.mxu0 0
    %299 = vmatpush1.bf16.msra.mxu0 %v280
    %300 = vmatprep.subr.bf16.mxu0 0
    %301 = vmatpush1.bf16.msra.mxu0 %v281
    %302 = vmatprep.subr.bf16.mxu0 0
    %303 = vmatpush1.bf16.msra.mxu0 %v282
    %304 = vmatprep.subr.bf16.mxu0 0
    %305 = vmatpush1.bf16.msra.mxu0 %v283
    %306 = vmatprep.subr.bf16.mxu0 0
    %307 = vmatpush1.bf16.msra.mxu0 %v284
    %308 = vmatprep.subr.bf16.mxu0 0
    %309 = vmatpush1.bf16.msra.mxu0 %v285
    %310 = vmatprep.subr.bf16.mxu0 0
    %311 = vmatpush1.bf16.msra.mxu0 0
    %312 = vmatprep.subr.bf16.mxu0 0
    %313 = vmatpush1.bf16.msra.mxu0 0
    %314 = vmatprep.subr.bf16.mxu0 0
    %315 = vmatpush1.bf16.msra.mxu0 0
    %316 = vmatprep.subr.bf16.mxu0 0
    %317 = vmatpush1.bf16.msra.mxu0 0
    %318 = vmatprep.subr.bf16.mxu0 0
    %319 = vmatpush1.bf16.msra.mxu0 0
    %320 = vmatprep.subr.bf16.mxu0 0
    %321 = vmatpush1.bf16.msra.mxu0 0
    %322 = vmatprep.subr.bf16.mxu0 0
    %323 = vmatpush1.bf16.msra.mxu0 0
    %324 = vmatprep.subr.bf16.mxu0 0
    %325 = vmatpush1.bf16.msra.mxu0 0
    %326 = vmatprep.mubr.bf16.mxu0 0
    %327 = vmatmul.mubr.bf16.gmra.mrb[0].mxu0 0
    %v328 = vpop.f32.mrb[0].mxu0
    %v329 = vadd.f32 0.0, %v328
    %v330 = vpop.f32.mrb[0].mxu0
    %v331 = vpop.f32.mrb[0].mxu0
    %v332 = vpop.f32.mrb[0].mxu0
    %333 = vdwg.mxu0
    %v334 = vadd.f32 %v220, %v329
    %v335 = vadd.f32 %v334, %v334
    %v336 = vsel %vm229, %v335, %v334
    %v337 = vxor.u32 %v336, 2147483648
    %v338 = vmul.f32 %v337, 1.442695
    %v339 = vpow.pop %v338
    %v340 = vadd.f32 %v339, 1.0
    %v341 = vrcp.pop %v340
    %v342 = vmul.f32 1.0, %v341
    %v343 = vadd.f32 %v342, %v342
    %v344 = vsub.f32 %v343, 1.0
    %v345 = vsel %vm229, %v344, %v342
    %346 = vrot.lane.b32.xlu0 %v345, 96
    %v347 = vpop.permute.xlu0 %346
    %348 = vrot.lane.b32.xlu0 %v345, 64
    %v349 = vpop.permute.xlu0 %348
    %350 = vrot.lane.b32.xlu0 %v345, 32
    %v351 = vpop.permute.xlu0 %350
    %v352 = vmul.f32 %v347, 0.0
    %v353 = vmul.f32 %v345, %v349
    %v354 = vadd.f32 %v352, %v353
    %v355 = vtanh.pop %v354
    %v356 = vmul.f32 %v351, %v355
    %v357 = vpack.c.bf16 %v356, %v356
    %358 = vmatprep.subr.bf16.mxu0 0
    %359 = vmatpush1.bf16.msra.mxu0 %v278
    %360 = vmatprep.subr.bf16.mxu0 0
    %361 = vmatpush1.bf16.msra.mxu0 %v279
    %362 = vmatprep.subr.bf16.mxu0 0
    %363 = vmatpush1.bf16.msra.mxu0 %v280
    %364 = vmatprep.subr.bf16.mxu0 0
    %365 = vmatpush1.bf16.msra.mxu0 %v281
    %366 = vmatprep.subr.bf16.mxu0 0
    %367 = vmatpush1.bf16.msra.mxu0 %v282
    %368 = vmatprep.subr.bf16.mxu0 0
    %369 = vmatpush1.bf16.msra.mxu0 %v283
    %370 = vmatprep.subr.bf16.mxu0 0
    %371 = vmatpush1.bf16.msra.mxu0 %v284
    %372 = vmatprep.subr.bf16.mxu0 0
    %373 = vmatpush1.bf16.msra.mxu0 %v285
    %374 = vmatprep.subr.bf16.mxu0 0
    %375 = vmatpush1.bf16.msra.mxu0 0
    %376 = vmatprep.subr.bf16.mxu0 0
    %377 = vmatpush1.bf16.msra.mxu0 0
    %378 = vmatprep.subr.bf16.mxu0 0
    %379 = vmatpush1.bf16.msra.mxu0 0
    %380 = vmatprep.subr.bf16.mxu0 0
    %381 = vmatpush1.bf16.msra.mxu0 0
    %382 = vmatprep.subr.bf16.mxu0 0
    %383 = vmatpush1.bf16.msra.mxu0 0
    %384 = vmatprep.subr.bf16.mxu0 0
    %385 = vmatpush1.bf16.msra.mxu0 0
    %386 = vmatprep.subr.bf16.mxu0 0
    %387 = vmatpush1.bf16.msra.mxu0 0
    %388 = vmatprep.subr.bf16.mxu0 0
    %389 = vmatpush1.bf16.msra.mxu0 0
    %390 = vmatprep.mubr.bf16.mxu0 0
    %391 = vmatmul.mubr.bf16.gmra.mrb[0].mxu0 %v357
    %v392 = vpop.f32.mrb[0].mxu0
    %v393 = vadd.f32 0.0, %v392
    %v394 = vpop.f32.mrb[0].mxu0
    %v395 = vpop.f32.mrb[0].mxu0
    %v396 = vpop.f32.mrb[0].mxu0
    %397 = vdwg.mxu0
    %v399 = vrot.slane %v393, 7
    %v401 = vadd.f32 %v220, %v399
    %v402 = vadd.f32 %v401, %v401
    %v403 = vsel %vm229, %v402, %v401
    %v404 = vxor.u32 %v403, 2147483648
    %v405 = vmul.f32 %v404, 1.442695
    %v406 = vpow.pop %v405
    %v407 = vadd.f32 %v406, 1.0
    %v408 = vrcp.pop %v407
    %v409 = vmul.f32 1.0, %v408
    %v410 = vadd.f32 %v409, %v409
    %v411 = vsub.f32 %v410, 1.0
    %v412 = vsel %vm229, %v411, %v409
    %v414 = vrot.slane %v412, 1
    %416 = vrot.lane.b32.xlu0 %v414, 96
    %v417 = vpop.permute.xlu0 %416
    %418 = vrot.lane.b32.xlu0 %v414, 64
    %v419 = vpop.permute.xlu0 %418
    %420 = vrot.lane.b32.xlu0 %v414, 32
    %v421 = vpop.permute.xlu0 %420
    %v422 = vmul.f32 %v417, %v354
    %v424 = vrot.slane %v419, 7
    %v426 = vmul.f32 %v412, %v424
    %v428 = vrot.slane %v426, 1
    %v430 = vadd.f32 %v422, %v428
    %v431 = vtanh.pop %v430
    %v432 = vmul.f32 %v421, %v431
    %v433 = vpack.c.bf16 %v432, %v432
    %434 = vmatprep.subr.bf16.mxu0 0
    %435 = vmatpush1.bf16.msra.mxu0 %v278
    %436 = vmatprep.subr.bf16.mxu0 0
    %437 = vmatpush1.bf16.msra.mxu0 %v279
    %438 = vmatprep.subr.bf16.mxu0 0
    %439 = vmatpush1.bf16.msra.mxu0 %v280
    %440 = vmatprep.subr.bf16.mxu0 0
    %441 = vmatpush1.bf16.msra.mxu0 %v281
    %442 = vmatprep.subr.bf16.mxu0 0
    %443 = vmatpush1.bf16.msra.mxu0 %v282
    %444 = vmatprep.subr.bf16.mxu0 0
    %445 = vmatpush1.bf16.msra.mxu0 %v283
    %446 = vmatprep.subr.bf16.mxu0 0
    %447 = vmatpush1.bf16.msra.mxu0 %v284
    %448 = vmatprep.subr.bf16.mxu0 0
    %449 = vmatpush1.bf16.msra.mxu0 %v285
    %450 = vmatprep.subr.bf16.mxu0 0
    %451 = vmatpush1.bf16.msra.mxu0 0
    %452 = vmatprep.subr.bf16.mxu0 0
    %453 = vmatpush1.bf16.msra.mxu0 0
    %454 = vmatprep.subr.bf16.mxu0 0
    %455 = vmatpush1.bf16.msra.mxu0 0
    %456 = vmatprep.subr.bf16.mxu0 0
    %457 = vmatpush1.bf16.msra.mxu0 0
    %458 = vmatprep.subr.bf16.mxu0 0
    %459 = vmatpush1.bf16.msra.mxu0 0
    %460 = vmatprep.subr.bf16.mxu0 0
    %461 = vmatpush1.bf16.msra.mxu0 0
    %462 = vmatprep.subr.bf16.mxu0 0
    %463 = vmatpush1.bf16.msra.mxu0 0
    %464 = vmatprep.subr.bf16.mxu0 0
    %465 = vmatpush1.bf16.msra.mxu0 0
    %466 = vmatprep.mubr.bf16.mxu0 0
    %467 = vmatmul.mubr.bf16.gmra.mrb[0].mxu0 %v433
    %v468 = vpop.f32.mrb[0].mxu0
    %v469 = vadd.f32 0.0, %v468
    %v470 = vpop.f32.mrb[0].mxu0
    %v471 = vpop.f32.mrb[0].mxu0
    %v472 = vpop.f32.mrb[0].mxu0
    %473 = vdwg.mxu0
    %v475 = vrot.slane %v469, 6
    %v477 = vadd.f32 %v220, %v475
    %v478 = vadd.f32 %v477, %v477
    %v479 = vsel %vm229, %v478, %v477
    %v480 = vxor.u32 %v479, 2147483648
    %v481 = vmul.f32 %v480, 1.442695
    %v482 = vpow.pop %v481
    %v483 = vadd.f32 %v482, 1.0
    %v484 = vrcp.pop %v483
    %v485 = vmul.f32 1.0, %v484
    %v486 = vadd.f32 %v485, %v485
    %v487 = vsub.f32 %v486, 1.0
    %v488 = vsel %vm229, %v487, %v485
    %v490 = vrot.slane %v488, 2
    %492 = vrot.lane.b32.xlu0 %v490, 96
    %v493 = vpop.permute.xlu0 %492
    %494 = vrot.lane.b32.xlu0 %v490, 64
    %v495 = vpop.permute.xlu0 %494
    %496 = vrot.lane.b32.xlu0 %v490, 32
    %v497 = vpop.permute.xlu0 %496
    %v498 = vmul.f32 %v493, %v430
    %v500 = vrot.slane %v495, 6
    %v502 = vmul.f32 %v488, %v500
    %v504 = vrot.slane %v502, 2
    %v506 = vadd.f32 %v498, %v504
    %v507 = vtanh.pop %v506
    %v508 = vmul.f32 %v497, %v507
    %v509 = vpack.c.bf16 %v508, %v508
    %510 = vmatprep.subr.bf16.mxu0 0
    %511 = vmatpush1.bf16.msra.mxu0 %v278
    %512 = vmatprep.subr.bf16.mxu0 0
    %513 = vmatpush1.bf16.msra.mxu0 %v279
    %514 = vmatprep.subr.bf16.mxu0 0
    %515 = vmatpush1.bf16.msra.mxu0 %v280
    %516 = vmatprep.subr.bf16.mxu0 0
    %517 = vmatpush1.bf16.msra.mxu0 %v281
    %518 = vmatprep.subr.bf16.mxu0 0
    %519 = vmatpush1.bf16.msra.mxu0 %v282
    %520 = vmatprep.subr.bf16.mxu0 0
    %521 = vmatpush1.bf16.msra.mxu0 %v283
    %522 = vmatprep.subr.bf16.mxu0 0
    %523 = vmatpush1.bf16.msra.mxu0 %v284
    %524 = vmatprep.subr.bf16.mxu0 0
    %525 = vmatpush1.bf16.msra.mxu0 %v285
    %526 = vmatprep.subr.bf16.mxu0 0
    %527 = vmatpush1.bf16.msra.mxu0 0
    %528 = vmatprep.subr.bf16.mxu0 0
    %529 = vmatpush1.bf16.msra.mxu0 0
    %530 = vmatprep.subr.bf16.mxu0 0
    %531 = vmatpush1.bf16.msra.mxu0 0
    %532 = vmatprep.subr.bf16.mxu0 0
    %533 = vmatpush1.bf16.msra.mxu0 0
    %534 = vmatprep.subr.bf16.mxu0 0
    %535 = vmatpush1.bf16.msra.mxu0 0
    %536 = vmatprep.subr.bf16.mxu0 0
    %537 = vmatpush1.bf16.msra.mxu0 0
    %538 = vmatprep.subr.bf16.mxu0 0
    %539 = vmatpush1.bf16.msra.mxu0 0
    %540 = vmatprep.subr.bf16.mxu0 0
    %541 = vmatpush1.bf16.msra.mxu0 0
    %542 = vmatprep.mubr.bf16.mxu0 0
    %543 = vmatmul.mubr.bf16.gmra.mrb[0].mxu0 %v509
    %v544 = vpop.f32.mrb[0].mxu0
    %v545 = vadd.f32 0.0, %v544
    %v546 = vpop.f32.mrb[0].mxu0
    %v547 = vpop.f32.mrb[0].mxu0
    %v548 = vpop.f32.mrb[0].mxu0
    %549 = vdwg.mxu0
    %v551 = vrot.slane %v545, 5
    %v553 = vadd.f32 %v220, %v551
    %v554 = vadd.f32 %v553, %v553
    %v555 = vsel %vm229, %v554, %v553
    %v556 = vxor.u32 %v555, 2147483648
    %v557 = vmul.f32 %v556, 1.442695
    %v558 = vpow.pop %v557
    %v559 = vadd.f32 %v558, 1.0
    %v560 = vrcp.pop %v559
    %v561 = vmul.f32 1.0, %v560
    %v562 = vadd.f32 %v561, %v561
    %v563 = vsub.f32 %v562, 1.0
    %v564 = vsel %vm229, %v563, %v561
    %v566 = vrot.slane %v564, 3
    %568 = vrot.lane.b32.xlu0 %v566, 96
    %v569 = vpop.permute.xlu0 %568
    %570 = vrot.lane.b32.xlu0 %v566, 64
    %v571 = vpop.permute.xlu0 %570
    %572 = vrot.lane.b32.xlu0 %v566, 32
    %v573 = vpop.permute.xlu0 %572
    %v574 = vmul.f32 %v569, %v506
    %v576 = vrot.slane %v571, 5
    %v578 = vmul.f32 %v564, %v576
    %v580 = vrot.slane %v578, 3
    %v582 = vadd.f32 %v574, %v580
    %v583 = vtanh.pop %v582
    %v584 = vmul.f32 %v573, %v583
    %v585 = vpack.c.bf16 %v584, %v584
    %586 = vmatprep.subr.bf16.mxu0 0
    %587 = vmatpush1.bf16.msra.mxu0 %v278
    %588 = vmatprep.subr.bf16.mxu0 0
    %589 = vmatpush1.bf16.msra.mxu0 %v279
    %590 = vmatprep.subr.bf16.mxu0 0
    %591 = vmatpush1.bf16.msra.mxu0 %v280
    %592 = vmatprep.subr.bf16.mxu0 0
    %593 = vmatpush1.bf16.msra.mxu0 %v281
    %594 = vmatprep.subr.bf16.mxu0 0
    %595 = vmatpush1.bf16.msra.mxu0 %v282
    %596 = vmatprep.subr.bf16.mxu0 0
    %597 = vmatpush1.bf16.msra.mxu0 %v283
    %598 = vmatprep.subr.bf16.mxu0 0
    %599 = vmatpush1.bf16.msra.mxu0 %v284
    %600 = vmatprep.subr.bf16.mxu0 0
    %601 = vmatpush1.bf16.msra.mxu0 %v285
    %602 = vmatprep.subr.bf16.mxu0 0
    %603 = vmatpush1.bf16.msra.mxu0 0
    %604 = vmatprep.subr.bf16.mxu0 0
    %605 = vmatpush1.bf16.msra.mxu0 0
    %606 = vmatprep.subr.bf16.mxu0 0
    %607 = vmatpush1.bf16.msra.mxu0 0
    %608 = vmatprep.subr.bf16.mxu0 0
    %609 = vmatpush1.bf16.msra.mxu0 0
    %610 = vmatprep.subr.bf16.mxu0 0
    %611 = vmatpush1.bf16.msra.mxu0 0
    %612 = vmatprep.subr.bf16.mxu0 0
    %613 = vmatpush1.bf16.msra.mxu0 0
    %614 = vmatprep.subr.bf16.mxu0 0
    %615 = vmatpush1.bf16.msra.mxu0 0
    %616 = vmatprep.subr.bf16.mxu0 0
    %617 = vmatpush1.bf16.msra.mxu0 0
    %618 = vmatprep.mubr.bf16.mxu0 0
    %619 = vmatmul.mubr.bf16.gmra.mrb[0].mxu0 %v585
    %v620 = vpop.f32.mrb[0].mxu0
    %v621 = vadd.f32 0.0, %v620
    %v622 = vpop.f32.mrb[0].mxu0
    %v623 = vpop.f32.mrb[0].mxu0
    %v624 = vpop.f32.mrb[0].mxu0
    %625 = vdwg.mxu0
    %v627 = vrot.slane %v621, 4
    %v629 = vadd.f32 %v220, %v627
    %v630 = vadd.f32 %v629, %v629
    %v631 = vsel %vm229, %v630, %v629
    %v632 = vxor.u32 %v631, 2147483648
    %v633 = vmul.f32 %v632, 1.442695
    %v634 = vpow.pop %v633
    %v635 = vadd.f32 %v634, 1.0
    %v636 = vrcp.pop %v635
    %v637 = vmul.f32 1.0, %v636
    %v638 = vadd.f32 %v637, %v637
    %v639 = vsub.f32 %v638, 1.0
    %v640 = vsel %vm229, %v639, %v637
    %v642 = vrot.slane %v640, 4
    %644 = vrot.lane.b32.xlu0 %v642, 96
    %v645 = vpop.permute.xlu0 %644
    %646 = vrot.lane.b32.xlu0 %v642, 64
    %v647 = vpop.permute.xlu0 %646
    %648 = vrot.lane.b32.xlu0 %v642, 32
    %v649 = vpop.permute.xlu0 %648
    %v650 = vmul.f32 %v645, %v582
    %v652 = vrot.slane %v647, 4
    %v654 = vmul.f32 %v640, %v652
    %v656 = vrot.slane %v654, 4
    %v658 = vadd.f32 %v650, %v656
    %v659 = vtanh.pop %v658
    %v660 = vmul.f32 %v649, %v659
    %v661 = vpack.c.bf16 %v660, %v660
    %662 = vmatprep.subr.bf16.mxu0 0
    %663 = vmatpush1.bf16.msra.mxu0 %v278
    %664 = vmatprep.subr.bf16.mxu0 0
    %665 = vmatpush1.bf16.msra.mxu0 %v279
    %666 = vmatprep.subr.bf16.mxu0 0
    %667 = vmatpush1.bf16.msra.mxu0 %v280
    %668 = vmatprep.subr.bf16.mxu0 0
    %669 = vmatpush1.bf16.msra.mxu0 %v281
    %670 = vmatprep.subr.bf16.mxu0 0
    %671 = vmatpush1.bf16.msra.mxu0 %v282
    %672 = vmatprep.subr.bf16.mxu0 0
    %673 = vmatpush1.bf16.msra.mxu0 %v283
    %674 = vmatprep.subr.bf16.mxu0 0
    %675 = vmatpush1.bf16.msra.mxu0 %v284
    %676 = vmatprep.subr.bf16.mxu0 0
    %677 = vmatpush1.bf16.msra.mxu0 %v285
    %678 = vmatprep.subr.bf16.mxu0 0
    %679 = vmatpush1.bf16.msra.mxu0 0
    %680 = vmatprep.subr.bf16.mxu0 0
    %681 = vmatpush1.bf16.msra.mxu0 0
    %682 = vmatprep.subr.bf16.mxu0 0
    %683 = vmatpush1.bf16.msra.mxu0 0
    %684 = vmatprep.subr.bf16.mxu0 0
    %685 = vmatpush1.bf16.msra.mxu0 0
    %686 = vmatprep.subr.bf16.mxu0 0
    %687 = vmatpush1.bf16.msra.mxu0 0
    %688 = vmatprep.subr.bf16.mxu0 0
    %689 = vmatpush1.bf16.msra.mxu0 0
    %690 = vmatprep.subr.bf16.mxu0 0
    %691 = vmatpush1.bf16.msra.mxu0 0
    %692 = vmatprep.subr.bf16.mxu0 0
    %693 = vmatpush1.bf16.msra.mxu0 0
    %694 = vmatprep.mubr.bf16.mxu0 0
    %695 = vmatmul.mubr.bf16.gmra.mrb[0].mxu0 %v661
    %v696 = vpop.f32.mrb[0].mxu0
    %v697 = vadd.f32 0.0, %v696
    %v698 = vpop.f32.mrb[0].mxu0
    %v699 = vpop.f32.mrb[0].mxu0
    %v700 = vpop.f32.mrb[0].mxu0
    %701 = vdwg.mxu0
    %v703 = vrot.slane %v697, 3
    %v705 = vadd.f32 %v220, %v703
    %v706 = vadd.f32 %v705, %v705
    %v707 = vsel %vm229, %v706, %v705
    %v708 = vxor.u32 %v707, 2147483648
    %v709 = vmul.f32 %v708, 1.442695
    %v710 = vpow.pop %v709
    %v711 = vadd.f32 %v710, 1.0
    %v712 = vrcp.pop %v711
    %v713 = vmul.f32 1.0, %v712
    %v714 = vadd.f32 %v713, %v713
    %v715 = vsub.f32 %v714, 1.0
    %v716 = vsel %vm229, %v715, %v713
    %v718 = vrot.slane %v716, 5
    %720 = vrot.lane.b32.xlu0 %v718, 96
    %v721 = vpop.permute.xlu0 %720
    %722 = vrot.lane.b32.xlu0 %v718, 64
    %v723 = vpop.permute.xlu0 %722
    %724 = vrot.lane.b32.xlu0 %v718, 32
    %v725 = vpop.permute.xlu0 %724
    %v726 = vmul.f32 %v721, %v658
    %v728 = vrot.slane %v723, 3
    %v730 = vmul.f32 %v716, %v728
    %v732 = vrot.slane %v730, 5
    %v734 = vadd.f32 %v726, %v732
    %v735 = vtanh.pop %v734
    %v736 = vmul.f32 %v725, %v735
    %v737 = vpack.c.bf16 %v736, %v736
    %738 = vmatprep.subr.bf16.mxu0 0
    %739 = vmatpush1.bf16.msra.mxu0 %v278
    %740 = vmatprep.subr.bf16.mxu0 0
    %741 = vmatpush1.bf16.msra.mxu0 %v279
    %742 = vmatprep.subr.bf16.mxu0 0
    %743 = vmatpush1.bf16.msra.mxu0 %v280
    %744 = vmatprep.subr.bf16.mxu0 0
    %745 = vmatpush1.bf16.msra.mxu0 %v281
    %746 = vmatprep.subr.bf16.mxu0 0
    %747 = vmatpush1.bf16.msra.mxu0 %v282
    %748 = vmatprep.subr.bf16.mxu0 0
    %749 = vmatpush1.bf16.msra.mxu0 %v283
    %750 = vmatprep.subr.bf16.mxu0 0
    %751 = vmatpush1.bf16.msra.mxu0 %v284
    %752 = vmatprep.subr.bf16.mxu0 0
    %753 = vmatpush1.bf16.msra.mxu0 %v285
    %754 = vmatprep.subr.bf16.mxu0 0
    %755 = vmatpush1.bf16.msra.mxu0 0
    %756 = vmatprep.subr.bf16.mxu0 0
    %757 = vmatpush1.bf16.msra.mxu0 0
    %758 = vmatprep.subr.bf16.mxu0 0
    %759 = vmatpush1.bf16.msra.mxu0 0
    %760 = vmatprep.subr.bf16.mxu0 0
    %761 = vmatpush1.bf16.msra.mxu0 0
    %762 = vmatprep.subr.bf16.mxu0 0
    %763 = vmatpush1.bf16.msra.mxu0 0
    %764 = vmatprep.subr.bf16.mxu0 0
    %765 = vmatpush1.bf16.msra.mxu0 0
    %766 = vmatprep.subr.bf16.mxu0 0
    %767 = vmatpush1.bf16.msra.mxu0 0
    %768 = vmatprep.subr.bf16.mxu0 0
    %769 = vmatpush1.bf16.msra.mxu0 0
    %770 = vmatprep.mubr.bf16.mxu0 0
    %771 = vmatmul.mubr.bf16.gmra.mrb[0].mxu0 %v737
    %v772 = vpop.f32.mrb[0].mxu0
    %v773 = vadd.f32 0.0, %v772
    %v774 = vpop.f32.mrb[0].mxu0
    %v775 = vpop.f32.mrb[0].mxu0
    %v776 = vpop.f32.mrb[0].mxu0
    %777 = vdwg.mxu0
    %v779 = vrot.slane %v773, 2
    %v781 = vadd.f32 %v220, %v779
    %v782 = vadd.f32 %v781, %v781
    %v783 = vsel %vm229, %v782, %v781
    %v784 = vxor.u32 %v783, 2147483648
    %v785 = vmul.f32 %v784, 1.442695
    %v786 = vpow.pop %v785
    %v787 = vadd.f32 %v786, 1.0
    %v788 = vrcp.pop %v787
    %v789 = vmul.f32 1.0, %v788
    %v790 = vadd.f32 %v789, %v789
    %v791 = vsub.f32 %v790, 1.0
    %v792 = vsel %vm229, %v791, %v789
    %v794 = vrot.slane %v792, 6
    %796 = vrot.lane.b32.xlu0 %v794, 96
    %v797 = vpop.permute.xlu0 %796
    %798 = vrot.lane.b32.xlu0 %v794, 64
    %v799 = vpop.permute.xlu0 %798
    %800 = vrot.lane.b32.xlu0 %v794, 32
    %v801 = vpop.permute.xlu0 %800
    %v802 = vmul.f32 %v797, %v734
    %v804 = vrot.slane %v799, 2
    %v806 = vmul.f32 %v792, %v804
    %v808 = vrot.slane %v806, 6
    %v810 = vadd.f32 %v802, %v808
    %v811 = vtanh.pop %v810
    %v812 = vmul.f32 %v801, %v811
    %v813 = vpack.c.bf16 %v812, %v812
    %814 = vmatprep.subr.bf16.mxu0 0
    %815 = vmatpush1.bf16.msra.mxu0 %v278
    %816 = vmatprep.subr.bf16.mxu0 0
    %817 = vmatpush1.bf16.msra.mxu0 %v279
    %818 = vmatprep.subr.bf16.mxu0 0
    %819 = vmatpush1.bf16.msra.mxu0 %v280
    %820 = vmatprep.subr.bf16.mxu0 0
    %821 = vmatpush1.bf16.msra.mxu0 %v281
    %822 = vmatprep.subr.bf16.mxu0 0
    %823 = vmatpush1.bf16.msra.mxu0 %v282
    %824 = vmatprep.subr.bf16.mxu0 0
    %825 = vmatpush1.bf16.msra.mxu0 %v283
    %826 = vmatprep.subr.bf16.mxu0 0
    %827 = vmatpush1.bf16.msra.mxu0 %v284
    %828 = vmatprep.subr.bf16.mxu0 0
    %829 = vmatpush1.bf16.msra.mxu0 %v285
    %830 = vmatprep.subr.bf16.mxu0 0
    %831 = vmatpush1.bf16.msra.mxu0 0
    %832 = vmatprep.subr.bf16.mxu0 0
    %833 = vmatpush1.bf16.msra.mxu0 0
    %834 = vmatprep.subr.bf16.mxu0 0
    %835 = vmatpush1.bf16.msra.mxu0 0
    %836 = vmatprep.subr.bf16.mxu0 0
    %837 = vmatpush1.bf16.msra.mxu0 0
    %838 = vmatprep.subr.bf16.mxu0 0
    %839 = vmatpush1.bf16.msra.mxu0 0
    %840 = vmatprep.subr.bf16.mxu0 0
    %841 = vmatpush1.bf16.msra.mxu0 0
    %842 = vmatprep.subr.bf16.mxu0 0
    %843 = vmatpush1.bf16.msra.mxu0 0
    %844 = vmatprep.subr.bf16.mxu0 0
    %845 = vmatpush1.bf16.msra.mxu0 0
    %846 = vmatprep.mubr.bf16.mxu0 0
    %847 = vmatmul.mubr.bf16.gmra.mrb[0].mxu0 %v813
    %v848 = vpop.f32.mrb[0].mxu0
    %v849 = vadd.f32 0.0, %v848
    %v850 = vpop.f32.mrb[0].mxu0
    %v851 = vpop.f32.mrb[0].mxu0
    %v852 = vpop.f32.mrb[0].mxu0
    %853 = vdwg.mxu0
    %v855 = vrot.slane %v849, 1
    %v857 = vadd.f32 %v220, %v855
    %v858 = vadd.f32 %v857, %v857
    %v859 = vsel %vm229, %v858, %v857
    %v860 = vxor.u32 %v859, 2147483648
    %v861 = vmul.f32 %v860, 1.442695
    %v862 = vpow.pop %v861
    %v863 = vadd.f32 %v862, 1.0
    %v864 = vrcp.pop %v863
    %v865 = vmul.f32 1.0, %v864
    %v866 = vadd.f32 %v865, %v865
    %v867 = vsub.f32 %v866, 1.0
    %v868 = vsel %vm229, %v867, %v865
    %v870 = vrot.slane %v868, 7
    %872 = vrot.lane.b32.xlu0 %v870, 96
    %v873 = vpop.permute.xlu0 %872
    %874 = vrot.lane.b32.xlu0 %v870, 64
    %v875 = vpop.permute.xlu0 %874
    %876 = vrot.lane.b32.xlu0 %v870, 32
    %v877 = vpop.permute.xlu0 %876
    %v878 = vmul.f32 %v873, %v810
    %v880 = vrot.slane %v875, 1
    %v882 = vmul.f32 %v868, %v880
    %v884 = vrot.slane %v882, 7
    %v886 = vadd.f32 %v878, %v884
    %v887 = vtanh.pop %v886
    %v888 = vmul.f32 %v877, %v887
    %v889 = vld [vmem:[%s4] sm:$0xff]
    %v890 = vld [vmem:[%s4 + $0x8] sm:$0xff]
    %v891 = vld [vmem:[%s4 + $0x10] sm:$0xff]
    %v892 = vld [vmem:[%s4 + $0x18] sm:$0xff]
    %v893 = vld [vmem:[%s4 + $0x20] sm:$0xff]
    %v894 = vld [vmem:[%s4 + $0x28] sm:$0xff]
    %v895 = vld [vmem:[%s4 + $0x30] sm:$0xff]
    %v896 = vld [vmem:[%s4 + $0x38] sm:$0xff]
    %v897 = vld [vmem:[%s4 + $0x40] sm:$0xff]
    %v898 = vld [vmem:[%s4 + $0x48] sm:$0xff]
    %v899 = vld [vmem:[%s4 + $0x50] sm:$0xff]
    %v900 = vld [vmem:[%s4 + $0x58] sm:$0xff]
    %v901 = vld [vmem:[%s4 + $0x60] sm:$0xff]
    %v902 = vld [vmem:[%s4 + $0x68] sm:$0xff]
    %v903 = vld [vmem:[%s4 + $0x70] sm:$0xff]
    %v904 = vld [vmem:[%s4 + $0x78] sm:$0xff]
    %v905 = vld [vmem:[%s5] sm:$0x1]
    %906 = vmatprep.subr.mxu0 0.0
    %907 = vmatpush1.msra.mxu0 %v889
    %908 = vmatprep.subr.mxu0 0.0
    %909 = vmatpush1.msra.mxu0 %v890
    %910 = vmatprep.subr.mxu0 0.0
    %911 = vmatpush1.msra.mxu0 %v891
    %912 = vmatprep.subr.mxu0 0.0
    %913 = vmatpush1.msra.mxu0 %v892
    %914 = vmatprep.subr.mxu0 0.0
    %915 = vmatpush1.msra.mxu0 %v893
    %916 = vmatprep.subr.mxu0 0.0
    %917 = vmatpush1.msra.mxu0 %v894
    %918 = vmatprep.subr.mxu0 0.0
    %919 = vmatpush1.msra.mxu0 %v895
    %920 = vmatprep.subr.mxu0 0.0
    %921 = vmatpush1.msra.mxu0 %v896
    %922 = vmatprep.subr.mxu0 0.0
    %923 = vmatpush1.msra.mxu0 %v897
    %924 = vmatprep.subr.mxu0 0.0
    %925 = vmatpush1.msra.mxu0 %v898
    %926 = vmatprep.subr.mxu0 0.0
    %927 = vmatpush1.msra.mxu0 %v899
    %928 = vmatprep.subr.mxu0 0.0
    %929 = vmatpush1.msra.mxu0 %v900
    %930 = vmatprep.subr.mxu0 0.0
    %931 = vmatpush1.msra.mxu0 %v901
    %932 = vmatprep.subr.mxu0 0.0
    %933 = vmatpush1.msra.mxu0 %v902
    %934 = vmatprep.subr.mxu0 0.0
    %935 = vmatpush1.msra.mxu0 %v903
    %936 = vmatprep.subr.mxu0 0.0
    %937 = vmatpush1.msra.mxu0 %v904
    %938 = vmatprep.subr.mxu0 0.0
    %939 = vmatpush1.msra.mxu0 0.0
    %940 = vmatprep.subr.mxu0 0.0
    %941 = vmatpush1.msra.mxu0 0.0
    %942 = vmatprep.subr.mxu0 0.0
    %943 = vmatpush1.msra.mxu0 0.0
    %944 = vmatprep.subr.mxu0 0.0
    %945 = vmatpush1.msra.mxu0 0.0
    %946 = vmatprep.subr.mxu0 0.0
    %947 = vmatpush1.msra.mxu0 0.0
    %948 = vmatprep.subr.mxu0 0.0
    %949 = vmatpush1.msra.mxu0 0.0
    %950 = vmatprep.subr.mxu0 0.0
    %951 = vmatpush1.msra.mxu0 0.0
    %952 = vmatprep.subr.mxu0 0.0
    %953 = vmatpush1.msra.mxu0 0.0
    %954 = vmatprep.subr.mxu0 0.0
    %955 = vmatpush1.msra.mxu0 0.0
    %956 = vmatprep.subr.mxu0 0.0
    %957 = vmatpush1.msra.mxu0 0.0
    %958 = vmatprep.subr.mxu0 0.0
    %959 = vmatpush1.msra.mxu0 0.0
    %960 = vmatprep.subr.mxu0 0.0
    %961 = vmatpush1.msra.mxu0 0.0
    %962 = vmatprep.subr.mxu0 0.0
    %963 = vmatpush1.msra.mxu0 0.0
    %964 = vmatprep.subr.mxu0 0.0
    %965 = vmatpush1.msra.mxu0 0.0
    %966 = vmatprep.subr.mxu0 0.0
    %967 = vmatpush1.msra.mxu0 0.0
    %968 = vmatprep.subr.mxu0 0.0
    %969 = vmatpush1.msra.mxu0 0.0
    %970 = vmatprep.mubr.f32.mxu0 0.0
    %971 = vmatmul.mubr.f32.gmra.mrb[0].mxu0 %v888
    %v972 = vpop.f32.mrb[0].mxu0
    %v973 = vadd.f32 %v905, %v972
    %v974 = vpop.f32.mrb[0].mxu0
    %975 = vdwg.mxu0
    %vm976 = vcmask 122880
    %v977 = vsel %vm976, %v973, -inf
    %978 = vmax.xlane.f32.xlu0 %v977
    %v979 = vpop.xlane.xlu0 %978
    %v980 = vsub.f32 %v973, %v979
    %v981 = vmul.f32 %v980, 1.442695
    %v982 = vpow.pop %v981
    %v983 = vsel %vm976, %v982, 0.0
    %984 = vadd.xlane.f32.xlu0 %v983
    %v985 = vpop.xlane.xlu0 %984
    %v986 = vrcp.pop %v985
    %v987 = vmul.f32 %v982, %v986
    %988 = vst.msk [vmem:[#allocation5] sm:$0x1] %vm976, %v987
    // Predicated region
    $region30: #{_forward_impl.1} parent=1 // pred_check
      _
    $region31: #{_forward_impl.1} parent=1 // pred_check_branch
      %990 = sbr.rel (0) target = $region33
    $region32: #{_forward_impl.1} parent=1 // pred_region
      %s992 = ssub.s32 16, 16
      %993 = vsyncadd [#allocation4], %s992
      %s995 = sshll.u32 [#allocation5], 4
      %s996 = int_to_ptr.vmem [resolvable:$true] %s995
      %998 = dma.vmem_to_hbm [thread:$0]  %s996, 16, %s6, [#allocation4]
    $region33: #{_forward_impl.1} parent=1 // pred_fallthru
      _
    // Predicated region
    $region34: #{_forward_impl.1} parent=1 // pred_check
      _
    $region35: #{_forward_impl.1} parent=1 // pred_check_branch
      %1000 = sbr.rel (0) target = $region37
    $region36: #{_forward_impl.1} parent=1 // pred_region
      %1001 = dma.done [#allocation4], 16
    $region37: #{_forward_impl.1} parent=1 // pred_fallthru
      _
    %1002 = vsyncpa [#allocation3], 1
    %1003 = vsyncpa [#allocation4], 1

</llo_original>
